<compile_context>
chip_gen: v7x
topology: tpu7x:2x2x1
jax: 0.10.0
libtpu: 0.0.40
codegen_flags: <defaults>
</compile_context>

<pallas_src>
import functools

import jax
import jax.numpy as jnp
from jax import lax
from jax.experimental import pallas as pl
from jax.experimental.pallas import tpu as pltpu


def gate_kernel(x_ref, w_ref, b_ref, o_ref, *, img_w):
    # x_ref: (1, Cg, HW)    Cg = nb*Cin stacked (batch, channel) rows, HW lane-dense
    # w_ref: (9, Cog, Cg)   per-tap block-diagonal weights, tap t = kh*3 + kw
    # b_ref: (Cog, 1)       Cog = nb*Cout
    # o_ref: (1, Cog, HW)
    cg = x_ref.shape[1]
    hw = x_ref.shape[2]

    x = x_ref[0]                                            # (Cg, HW) f32

    # Flat-pixel coordinates (VPU iota, computed once per grid step).
    pix = lax.broadcasted_iota(jnp.int32, (cg, hw), 1)
    col = pix % img_w
    # pltpu.roll wraps around, so image-row boundaries need explicit masks
    # for the kh = 0 / 2 taps, in addition to the kw = 0 / 2 column masks.
    row_masks = {0: pix >= img_w, 1: None, 2: pix < hw - img_w}
    col_masks = {0: col >= 1, 1: None, 2: col <= img_w - 2}

    acc = None
    for kh in range(3):
        for kw in range(3):
            t = kh * 3 + kw
            off = (kh - 1) * img_w + (kw - 1)
            # tap[c, p] = x[c, p + off]   (pltpu.roll == jnp.roll semantics)
            tap = x if off == 0 else pltpu.roll(x, (-off) % hw, axis=1)
            mask = row_masks[kh]
            if col_masks[kw] is not None:
                mask = (col_masks[kw] if mask is None
                        else jnp.logical_and(mask, col_masks[kw]))
            if mask is not None:
                tap = jnp.where(mask, tap, 0.0)
            # Small accumulating MXU push: (Cog, Cg) @ (Cg, HW) -> (Cog, HW).
            d = jnp.dot(w_ref[t], tap, preferred_element_type=jnp.float32)
            acc = d if acc is None else acc + d

    acc = acc + b_ref[...]                                  # (Cog, 1) broadcast
    # sigmoid(acc) via EUP tanh (free slot), not a VALU divide.
    gate = 0.5 * (jnp.tanh(acc * 0.5) + 1.0)
    o_ref[0] = (x * gate).astype(o_ref.dtype)               # x * sigmoid(conv(x))


def pick_batch_group(n_batch, c_in):
    """Largest divisor nb of N with nb*Cin <= 8 (one sublane granule)."""
    for cand in range(min(n_batch, 8), 0, -1):
        if n_batch % cand == 0 and cand * c_in <= 8:
            return cand
    return 1


def prepare_gate_params(w_oihw, b, nb):
    """Pack conv params ONCE (hoisted out of the per-call forward path).

    Returns:
      w_packed: (9, nb*Cout, nb*Cin) — per-tap block-diagonal weights.
      b_packed: (nb*Cout, 1)
    """
    c_out, c_in = w_oihw.shape[0], w_oihw.shape[1]
    w_taps = jnp.transpose(w_oihw, (2, 3, 0, 1)).reshape(9, c_out, c_in)
    eye = jnp.eye(nb, dtype=w_oihw.dtype)
    w_packed = jnp.einsum("nm,toi->tnomi", eye, w_taps).reshape(
        9, nb * c_out, nb * c_in)
    b_packed = jnp.tile(b, nb).reshape(nb * c_out, 1)
    return w_packed, b_packed


@functools.partial(jax.jit, static_argnames=("nb",))
def gate_forward(x_nchw, w_packed, b_packed, *, nb):
    """x_nchw: (N, Cin, H, W) f32; packed params from prepare_gate_params."""
    n, c_in, h, w = x_nchw.shape
    cog = b_packed.shape[0]
    c_out = cog // nb
    assert c_in == c_out, "Gate requires in_channel == out_channel"
    assert n % nb == 0
    hw = h * w
    cg = nb * c_in
    g = n // nb  # grid steps (parallel across TCs on v7x when > 1)

    # Pure view of contiguous NCHW data — no transpose / pad / copy in HBM.
    x_flat = x_nchw.reshape(g, cg, hw)

    out = pl.pallas_call(
        functools.partial(gate_kernel, img_w=w),
        out_shape=jax.ShapeDtypeStruct((g, cog, hw), x_nchw.dtype),
        grid_spec=pltpu.PrefetchScalarGridSpec(
            num_scalar_prefetch=0,
            grid=(g,),
            in_specs=[
                pl.BlockSpec((1, cg, hw), lambda i: (i, 0, 0)),
                pl.BlockSpec((9, cog, cg), lambda i: (0, 0, 0)),
                pl.BlockSpec((cog, 1), lambda i: (0, 0)),
            ],
            out_specs=pl.BlockSpec((1, cog, hw), lambda i: (i, 0, 0)),
        ),
        compiler_params=pltpu.CompilerParams(
            dimension_semantics=("parallel",)),
    )(x_flat, w_packed, b_packed)

    return out.reshape(n, c_out, h, w)


def gate_reference(x_nchw, w_oihw, b):
    """Pure-JAX reference matching PyTorch semantics (NCHW conv, pad=1)."""
    conv = lax.conv_general_dilated(
        x_nchw, w_oihw, window_strides=(1, 1), padding=((1, 1), (1, 1)),
        dimension_numbers=("NCHW", "OIHW", "NCHW"))
    conv = conv + b.reshape(1, -1, 1, 1)
    return x_nchw * jax.nn.sigmoid(conv)


if __name__ == "__main__":
    # Module: Gate(in_channel=4, out_channel=4) — equal so the broadcasted
    # elementwise product in forward() is well defined.
    N, C, H, W = 2, 4, 16, 16
    key = jax.random.PRNGKey(0)
    kx, kw_key = jax.random.split(key)

    x = jax.random.normal(kx, (N, C, H, W), dtype=jnp.float32)

    # Deterministic kaiming_normal_(mode='fan_in', nonlinearity='relu'):
    # std = sqrt(2 / fan_in), fan_in = C * 3 * 3 ; bias = 0.
    fan_in = C * 3 * 3
    std = (2.0 / fan_in) ** 0.5
    w = jax.random.normal(kw_key, (C, C, 3, 3), dtype=jnp.float32) * std
    b = jnp.zeros((C,), dtype=jnp.float32)

    # Weight packing done once, outside the forward path.
    nb = pick_batch_group(N, C)
    w_packed, b_packed = prepare_gate_params(w, b, nb)

    y = gate_forward(x, w_packed, b_packed, nb=nb)
    y = jax.block_until_ready(y)

    y_ref = gate_reference(x, w, b)
    assert y.shape == (N, C, H, W)
    err = float(jnp.max(jnp.abs(y - y_ref)))
    assert jnp.allclose(y, y_ref, atol=2e-5, rtol=2e-5), f"max abs err = {err}"

    print("KERNEL_OK")
</pallas_src>

<mosaic_0001>
module attributes {stable_mosaic.version = 11 : i64} {
  func.func @gate_kernel(%arg0: i32, %arg1: memref<1x8x256xf32, #tpu.memory_space<vmem>>, %arg2: memref<9x8x8xf32, #tpu.memory_space<vmem>>, %arg3: memref<8x1xf32, #tpu.memory_space<vmem>>, %arg4: memref<1x8x256xf32, #tpu.memory_space<vmem>>) attributes {dimension_semantics = [#tpu.dimension_semantics<parallel>], iteration_bounds = array<i64: 1>, scalar_prefetch = 0 : i64, scratch_operands = 0 : i64, tpu.core_type = #tpu.core_type<tc>, window_params = [{transform_indices = @transform_0, window_bounds = array<i64: 1, 8, 256>}, {pipeline_mode = #tpu.pipeline_mode<synchronous>, transform_indices = @transform_1, window_bounds = array<i64: 9, 8, 8>}, {pipeline_mode = #tpu.pipeline_mode<synchronous>, transform_indices = @transform_2, window_bounds = array<i64: 8, 1>}, {transform_indices = @transform_3, window_bounds = array<i64: 1, 8, 256>}]} {
    %c0 = arith.constant 0 : index
    %c0_0 = arith.constant 0 : index
    %c0_1 = arith.constant 0 : index
    %0 = vector.load %arg1[%c0, %c0_0, %c0_1] : memref<1x8x256xf32, #tpu.memory_space<vmem>>, vector<1x8x256xf32>
    %1 = vector.shape_cast %0 : vector<1x8x256xf32> to vector<8x256xf32>
    %2 = tpu.iota {dimensions = array<i32: 1>} : vector<8x256xi32>
    %c16_i32 = arith.constant 16 : i32
    %c0_i32 = arith.constant 0 : i32
    %3 = arith.cmpi eq, %c16_i32, %c0_i32 : i32
    %c1_i32 = arith.constant 1 : i32
    %4 = arith.select %3, %c1_i32, %c16_i32 : i32
    %5 = vector.broadcast %4 : i32 to vector<8x256xi32>
    %6 = arith.remsi %2, %5 : vector<8x256xi32>
    %c0_i32_2 = arith.constant 0 : i32
    %7 = vector.broadcast %c0_i32_2 : i32 to vector<8x256xi32>
    %8 = arith.cmpi ne, %6, %7 : vector<8x256xi32>
    %c0_i32_3 = arith.constant 0 : i32
    %9 = vector.broadcast %c0_i32_3 : i32 to vector<8x256xi32>
    %10 = arith.cmpi slt, %6, %9 : vector<8x256xi32>
    %c0_i32_4 = arith.constant 0 : i32
    %11 = arith.cmpi slt, %4, %c0_i32_4 : i32
    %12 = vector.broadcast %11 : i1 to vector<8x256xi1>
    %13 = vector.broadcast %12 : vector<8x256xi1> to vector<8x256xi1>
    %14 = arith.xori %10, %13 : vector<8x256xi1>
    %15 = arith.andi %14, %8 : vector<8x256xi1>
    %16 = vector.broadcast %4 : i32 to vector<8x256xi32>
    %17 = arith.addi %6, %16 : vector<8x256xi32>
    %18 = arith.select %15, %17, %6 : vector<8x256xi1>, vector<8x256xi32>
    %c16_i32_5 = arith.constant 16 : i32
    %19 = vector.broadcast %c16_i32_5 : i32 to vector<8x256xi32>
    %20 = arith.cmpi sge, %2, %19 : vector<8x256xi32>
    %c240_i32 = arith.constant 240 : i32
    %21 = vector.broadcast %c240_i32 : i32 to vector<8x256xi32>
    %22 = arith.cmpi slt, %2, %21 : vector<8x256xi32>
    %c1_i32_6 = arith.constant 1 : i32
    %23 = vector.broadcast %c1_i32_6 : i32 to vector<8x256xi32>
    %24 = arith.cmpi sge, %18, %23 : vector<8x256xi32>
    %c14_i32 = arith.constant 14 : i32
    %25 = vector.broadcast %c14_i32 : i32 to vector<8x256xi32>
    %26 = arith.cmpi sle, %18, %25 : vector<8x256xi32>
    %c17_i32 = arith.constant 17 : i32
    %27 = tpu.dynamic_rotate %1 by %c17_i32 dim 1 : vector<8x256xf32>, i32 -> vector<8x256xf32>
    %28 = arith.andi %20, %24 : vector<8x256xi1>
    %cst = arith.constant 0.000000e+00 : f32
    %29 = vector.broadcast %cst : f32 to vector<8x256xf32>
    %30 = arith.select %28, %27, %29 : vector<8x256xi1>, vector<8x256xf32>
    %c0_7 = arith.constant 0 : index
    %c0_8 = arith.constant 0 : index
    %c0_9 = arith.constant 0 : index
    %31 = vector.load %arg2[%c0_7, %c0_8, %c0_9] : memref<9x8x8xf32, #tpu.memory_space<vmem>>, vector<1x8x8xf32>
    %32 = vector.shape_cast %31 : vector<1x8x8xf32> to vector<8x8xf32>
    %cst_10 = arith.constant dense<0.000000e+00> : vector<8x256xf32>
    %33 = tpu.matmul %32, %30, %cst_10 {dimension_numbers = #tpu.dot_dimension_numbers<[1], [0], [0], [1], [0, 0, 1, 1], [], []>} : vector<8x8xf32>, vector<8x256xf32>, vector<8x256xf32> -> vector<8x256xf32>
    %c16_i32_11 = arith.constant 16 : i32
    %34 = tpu.dynamic_rotate %1 by %c16_i32_11 dim 1 : vector<8x256xf32>, i32 -> vector<8x256xf32>
    %cst_12 = arith.constant 0.000000e+00 : f32
    %35 = vector.broadcast %cst_12 : f32 to vector<8x256xf32>
    %36 = arith.select %20, %34, %35 : vector<8x256xi1>, vector<8x256xf32>
    %c1 = arith.constant 1 : index
    %c0_13 = arith.constant 0 : index
    %c0_14 = arith.constant 0 : index
    %37 = vector.load %arg2[%c1, %c0_13, %c0_14] : memref<9x8x8xf32, #tpu.memory_space<vmem>>, vector<1x8x8xf32>
    %38 = vector.shape_cast %37 : vector<1x8x8xf32> to vector<8x8xf32>
    %cst_15 = arith.constant dense<0.000000e+00> : vector<8x256xf32>
    %39 = tpu.matmul %38, %36, %cst_15 {dimension_numbers = #tpu.dot_dimension_numbers<[1], [0], [0], [1], [0, 0, 1, 1], [], []>} : vector<8x8xf32>, vector<8x256xf32>, vector<8x256xf32> -> vector<8x256xf32>
    %40 = arith.addf %33, %39 : vector<8x256xf32>
    %c15_i32 = arith.constant 15 : i32
    %41 = tpu.dynamic_rotate %1 by %c15_i32 dim 1 : vector<8x256xf32>, i32 -> vector<8x256xf32>
    %42 = arith.andi %20, %26 : vector<8x256xi1>
    %cst_16 = arith.constant 0.000000e+00 : f32
    %43 = vector.broadcast %cst_16 : f32 to vector<8x256xf32>
    %44 = arith.select %42, %41, %43 : vector<8x256xi1>, vector<8x256xf32>
    %c2 = arith.constant 2 : index
    %c0_17 = arith.constant 0 : index
    %c0_18 = arith.constant 0 : index
    %45 = vector.load %arg2[%c2, %c0_17, %c0_18] : memref<9x8x8xf32, #tpu.memory_space<vmem>>, vector<1x8x8xf32>
    %46 = vector.shape_cast %45 : vector<1x8x8xf32> to vector<8x8xf32>
    %cst_19 = arith.constant dense<0.000000e+00> : vector<8x256xf32>
    %47 = tpu.matmul %46, %44, %cst_19 {dimension_numbers = #tpu.dot_dimension_numbers<[1], [0], [0], [1], [0, 0, 1, 1], [], []>} : vector<8x8xf32>, vector<8x256xf32>, vector<8x256xf32> -> vector<8x256xf32>
    %48 = arith.addf %40, %47 : vector<8x256xf32>
    %c1_i32_20 = arith.constant 1 : i32
    %49 = tpu.dynamic_rotate %1 by %c1_i32_20 dim 1 : vector<8x256xf32>, i32 -> vector<8x256xf32>
    %cst_21 = arith.constant 0.000000e+00 : f32
    %50 = vector.broadcast %cst_21 : f32 to vector<8x256xf32>
    %51 = arith.select %24, %49, %50 : vector<8x256xi1>, vector<8x256xf32>
    %c3 = arith.constant 3 : index
    %c0_22 = arith.constant 0 : index
    %c0_23 = arith.constant 0 : index
    %52 = vector.load %arg2[%c3, %c0_22, %c0_23] : memref<9x8x8xf32, #tpu.memory_space<vmem>>, vector<1x8x8xf32>
    %53 = vector.shape_cast %52 : vector<1x8x8xf32> to vector<8x8xf32>
    %cst_24 = arith.constant dense<0.000000e+00> : vector<8x256xf32>
    %54 = tpu.matmul %53, %51, %cst_24 {dimension_numbers = #tpu.dot_dimension_numbers<[1], [0], [0], [1], [0, 0, 1, 1], [], []>} : vector<8x8xf32>, vector<8x256xf32>, vector<8x256xf32> -> vector<8x256xf32>
    %55 = arith.addf %48, %54 : vector<8x256xf32>
    %c4 = arith.constant 4 : index
    %c0_25 = arith.constant 0 : index
    %c0_26 = arith.constant 0 : index
    %56 = vector.load %arg2[%c4, %c0_25, %c0_26] : memref<9x8x8xf32, #tpu.memory_space<vmem>>, vector<1x8x8xf32>
    %57 = vector.shape_cast %56 : vector<1x8x8xf32> to vector<8x8xf32>
    %cst_27 = arith.constant dense<0.000000e+00> : vector<8x256xf32>
    %58 = tpu.matmul %57, %1, %cst_27 {dimension_numbers = #tpu.dot_dimension_numbers<[1], [0], [0], [1], [0, 0, 1, 1], [], []>} : vector<8x8xf32>, vector<8x256xf32>, vector<8x256xf32> -> vector<8x256xf32>
    %59 = arith.addf %55, %58 : vector<8x256xf32>
    %c255_i32 = arith.constant 255 : i32
    %60 = tpu.dynamic_rotate %1 by %c255_i32 dim 1 : vector<8x256xf32>, i32 -> vector<8x256xf32>
    %cst_28 = arith.constant 0.000000e+00 : f32
    %61 = vector.broadcast %cst_28 : f32 to vector<8x256xf32>
    %62 = arith.select %26, %60, %61 : vector<8x256xi1>, vector<8x256xf32>
    %c5 = arith.constant 5 : index
    %c0_29 = arith.constant 0 : index
    %c0_30 = arith.constant 0 : index
    %63 = vector.load %arg2[%c5, %c0_29, %c0_30] : memref<9x8x8xf32, #tpu.memory_space<vmem>>, vector<1x8x8xf32>
    %64 = vector.shape_cast %63 : vector<1x8x8xf32> to vector<8x8xf32>
    %cst_31 = arith.constant dense<0.000000e+00> : vector<8x256xf32>
    %65 = tpu.matmul %64, %62, %cst_31 {dimension_numbers = #tpu.dot_dimension_numbers<[1], [0], [0], [1], [0, 0, 1, 1], [], []>} : vector<8x8xf32>, vector<8x256xf32>, vector<8x256xf32> -> vector<8x256xf32>
    %66 = arith.addf %59, %65 : vector<8x256xf32>
    %c241_i32 = arith.constant 241 : i32
    %67 = tpu.dynamic_rotate %1 by %c241_i32 dim 1 : vector<8x256xf32>, i32 -> vector<8x256xf32>
    %68 = arith.andi %22, %24 : vector<8x256xi1>
    %cst_32 = arith.constant 0.000000e+00 : f32
    %69 = vector.broadcast %cst_32 : f32 to vector<8x256xf32>
    %70 = arith.select %68, %67, %69 : vector<8x256xi1>, vector<8x256xf32>
    %c6 = arith.constant 6 : index
    %c0_33 = arith.constant 0 : index
    %c0_34 = arith.constant 0 : index
    %71 = vector.load %arg2[%c6, %c0_33, %c0_34] : memref<9x8x8xf32, #tpu.memory_space<vmem>>, vector<1x8x8xf32>
    %72 = vector.shape_cast %71 : vector<1x8x8xf32> to vector<8x8xf32>
    %cst_35 = arith.constant dense<0.000000e+00> : vector<8x256xf32>
    %73 = tpu.matmul %72, %70, %cst_35 {dimension_numbers = #tpu.dot_dimension_numbers<[1], [0], [0], [1], [0, 0, 1, 1], [], []>} : vector<8x8xf32>, vector<8x256xf32>, vector<8x256xf32> -> vector<8x256xf32>
    %74 = arith.addf %66, %73 : vector<8x256xf32>
    %c240_i32_36 = arith.constant 240 : i32
    %75 = tpu.dynamic_rotate %1 by %c240_i32_36 dim 1 : vector<8x256xf32>, i32 -> vector<8x256xf32>
    %cst_37 = arith.constant 0.000000e+00 : f32
    %76 = vector.broadcast %cst_37 : f32 to vector<8x256xf32>
    %77 = arith.select %22, %75, %76 : vector<8x256xi1>, vector<8x256xf32>
    %c7 = arith.constant 7 : index
    %c0_38 = arith.constant 0 : index
    %c0_39 = arith.constant 0 : index
    %78 = vector.load %arg2[%c7, %c0_38, %c0_39] : memref<9x8x8xf32, #tpu.memory_space<vmem>>, vector<1x8x8xf32>
    %79 = vector.shape_cast %78 : vector<1x8x8xf32> to vector<8x8xf32>
    %cst_40 = arith.constant dense<0.000000e+00> : vector<8x256xf32>
    %80 = tpu.matmul %79, %77, %cst_40 {dimension_numbers = #tpu.dot_dimension_numbers<[1], [0], [0], [1], [0, 0, 1, 1], [], []>} : vector<8x8xf32>, vector<8x256xf32>, vector<8x256xf32> -> vector<8x256xf32>
    %81 = arith.addf %74, %80 : vector<8x256xf32>
    %c239_i32 = arith.constant 239 : i32
    %82 = tpu.dynamic_rotate %1 by %c239_i32 dim 1 : vector<8x256xf32>, i32 -> vector<8x256xf32>
    %83 = arith.andi %22, %26 : vector<8x256xi1>
    %cst_41 = arith.constant 0.000000e+00 : f32
    %84 = vector.broadcast %cst_41 : f32 to vector<8x256xf32>
    %85 = arith.select %83, %82, %84 : vector<8x256xi1>, vector<8x256xf32>
    %c8 = arith.constant 8 : index
    %c0_42 = arith.constant 0 : index
    %c0_43 = arith.constant 0 : index
    %86 = vector.load %arg2[%c8, %c0_42, %c0_43] : memref<9x8x8xf32, #tpu.memory_space<vmem>>, vector<1x8x8xf32>
    %87 = vector.shape_cast %86 : vector<1x8x8xf32> to vector<8x8xf32>
    %cst_44 = arith.constant dense<0.000000e+00> : vector<8x256xf32>
    %88 = tpu.matmul %87, %85, %cst_44 {dimension_numbers = #tpu.dot_dimension_numbers<[1], [0], [0], [1], [0, 0, 1, 1], [], []>} : vector<8x8xf32>, vector<8x256xf32>, vector<8x256xf32> -> vector<8x256xf32>
    %89 = arith.addf %81, %88 : vector<8x256xf32>
    %c0_45 = arith.constant 0 : index
    %c0_46 = arith.constant 0 : index
    %90 = vector.load %arg3[%c0_45, %c0_46] : memref<8x1xf32, #tpu.memory_space<vmem>>, vector<8x1xf32>
    %91 = vector.broadcast %90 : vector<8x1xf32> to vector<8x256xf32>
    %92 = arith.addf %89, %91 : vector<8x256xf32>
    %cst_47 = arith.constant 5.000000e-01 : f32
    %93 = vector.broadcast %cst_47 : f32 to vector<8x256xf32>
    %94 = arith.mulf %92, %93 : vector<8x256xf32>
    %95 = math.tanh %94 : vector<8x256xf32>
    %cst_48 = arith.constant 1.000000e+00 : f32
    %96 = vector.broadcast %cst_48 : f32 to vector<8x256xf32>
    %97 = arith.addf %95, %96 : vector<8x256xf32>
    %cst_49 = arith.constant 5.000000e-01 : f32
    %98 = vector.broadcast %cst_49 : f32 to vector<8x256xf32>
    %99 = arith.mulf %98, %97 : vector<8x256xf32>
    %100 = arith.mulf %1, %99 : vector<8x256xf32>
    %c0_50 = arith.constant 0 : index
    %c0_51 = arith.constant 0 : index
    %c0_52 = arith.constant 0 : index
    %101 = vector.load %arg4[%c0_50, %c0_51, %c0_52] : memref<1x8x256xf32, #tpu.memory_space<vmem>>, vector<1x8x256xf32>
    %102 = vector.shape_cast %101 : vector<1x8x256xf32> to vector<8x256xf32>
    %103 = vector.shape_cast %100 : vector<8x256xf32> to vector<1x8x256xf32>
    tpu.vector_store %arg4[%c0_50, %c0_51, %c0_52], %103 {strides = array<i32>} : memref<1x8x256xf32, #tpu.memory_space<vmem>>, vector<1x8x256xf32>,
    return
  }
  func.func @transform_0(%arg0: i32) -> (i32, i32, i32) {
    %c0_i32 = arith.constant 0 : i32
    %c0_i32_0 = arith.constant 0 : i32
    %c0_i32_1 = arith.constant 0 : i32
    return %arg0, %c0_i32, %c0_i32_0 : i32, i32, i32
  }
  func.func @transform_1(%arg0: i32) -> (i32, i32, i32) {
    %c0_i32 = arith.constant 0 : i32
    %c0_i32_0 = arith.constant 0 : i32
    %c0_i32_1 = arith.constant 0 : i32
    %c0_i32_2 = arith.constant 0 : i32
    return %c0_i32, %c0_i32_0, %c0_i32_1 : i32, i32, i32
  }
  func.func @transform_2(%arg0: i32) -> (i32, i32) {
    %c0_i32 = arith.constant 0 : i32
    %c0_i32_0 = arith.constant 0 : i32
    %c0_i32_1 = arith.constant 0 : i32
    return %c0_i32, %c0_i32_0 : i32, i32
  }
  func.func @transform_3(%arg0: i32) -> (i32, i32, i32) {
    %c0_i32 = arith.constant 0 : i32
    %c0_i32_0 = arith.constant 0 : i32
    %c0_i32_1 = arith.constant 0 : i32
    return %arg0, %c0_i32, %c0_i32_0 : i32, i32, i32
  }
}

</mosaic_0001>

<llo_original>
// kernel: gate_forward.1
$region0: #{gate_forward.1}
  #allocation0 [shape = 'u32[]', space=smem, size = 0x4, offset = 0x4, fixed_abs, tag = 'smem constant byte address 0x4 - core index']
  #allocation1 [shape = 'u32[144,128]{1,0:T(1,128)}', space=vmem, size = 0x12000, scoped, tag = 'internal scratch']
  %s0 = inlined_call_operand.vmem [shape: f32[1,8,256], index: 0, kind: input, shape index: {}]
  %s1 = inlined_call_operand.vmem [shape: f32[9,8,8], index: 1, kind: input, shape index: {}]
  %s2 = inlined_call_operand.vmem [shape: f32[8,1], index: 2, kind: input, shape index: {}]
  %s3 = inlined_call_operand.vmem [shape: f32[1,8,256], index: 3, kind: output, shape index: {}]
  %s4 = sld [smem:[#allocation0]]
  $region22: #{gate_forward.1} parent=0
    _
  %s6 = ssub.s32 1, %s4
  %s7 = scalar_select 0, %s6, %s4
  // Predicated region
  $region2: #{gate_forward.1} parent=0 // pred_check
    _
  $region3: #{gate_forward.1} parent=0 // pred_check_branch
    %9 = sbr.rel (0) target = $region5
  $region4: #{gate_forward.1} parent=0 // pred_region
    _
  $region5: #{gate_forward.1} parent=0 // pred_fallthru
    _
  // Predicated region
  $region6: #{gate_forward.1} parent=0 // pred_check
    _
  $region7: #{gate_forward.1} parent=0 // pred_check_branch
    %11 = sbr.rel (0) target = $region9
  $region8: #{gate_forward.1} parent=0 // pred_region
    _
  $region9: #{gate_forward.1} parent=0 // pred_fallthru
    _
  // Predicated region
  $region10: #{gate_forward.1} parent=0 // pred_check
    _
  $region11: #{gate_forward.1} parent=0 // pred_check_branch
    %13 = sbr.rel (0) target = $region13
  $region12: #{gate_forward.1} parent=0 // pred_region
    _
  $region13: #{gate_forward.1} parent=0 // pred_fallthru
    _
  %v14 = vld [vmem:[%s0] sm:$0xff]
  %v15 = vld [vmem:[%s0 + $0x8] sm:$0xff]
  %v16 = vlaneseq
  %v17 = vand.u32 %v16, 127
  %v18 = vadd.s32 %v17, 128
  %vm19 = vcmp.lt.s32.totalorder %v17, 0
  %v20 = vsub.s32 0, %v17
  %v21 = vsel %vm19, %v20, %v17
  %v22 = vshrl.u32 %v21, 4
  %v23 = vand.u32 %v21, 15
  %v24 = vsub.s32 0, %v23
  %v25 = vsel %vm19, %v24, %v23
  %vm26 = vcmp.lt.s32.totalorder %v18, 0
  %v27 = vsub.s32 0, %v18
  %v28 = vsel %vm26, %v27, %v18
  %v29 = vshrl.u32 %v28, 4
  %v30 = vand.u32 %v28, 15
  %v31 = vsub.s32 0, %v30
  %v32 = vsel %vm26, %v31, %v30
  %vm33 = vcmp.ne.s32.totalorder %v25, 0
  %vm34 = vcmp.ne.s32.totalorder %v32, 0
  %vm35 = vcmp.lt.s32.totalorder %v25, 0
  %vm36 = vcmp.lt.s32.totalorder %v32, 0
  %vm37 = vmand %vm35, %vm33
  %vm38 = vmand %vm36, %vm34
  %v39 = vadd.s32 %v25, 16
  %v40 = vadd.s32 %v32, 16
  %v41 = vsel %vm37, %v39, %v25
  %v42 = vsel %vm38, %v40, %v32
  %vm43 = vcmp.ge.s32.totalorder %v17, 16
  %vm44 = vcmp.ge.s32.totalorder %v18, 16
  %vm45 = vcmp.lt.s32.totalorder %v17, 240
  %vm46 = vcmp.lt.s32.totalorder %v18, 240
  %vm47 = vcmp.ge.s32.totalorder %v41, 1
  %vm48 = vcmp.ge.s32.totalorder %v42, 1
  %vm49 = vcmp.le.s32.totalorder %v41, 14
  %vm50 = vcmp.le.s32.totalorder %v42, 14
  %51 = vrot.lane.b32.xlu0 %v14, 17
  %v52 = vpop.permute.xlu0 %51
  %53 = vrot.lane.b32.xlu0 %v15, 17
  %v54 = vpop.permute.xlu0 %53
  %vm55 = vcmp.lt.s32.totalorder %v17, 17
  %v56 = vsel %vm55, %v52, %v54
  %v57 = vsel %vm55, %v54, %v52
  %vm58 = vmand %vm43, %vm47
  %vm59 = vmand %vm44, %vm48
  %v60 = vsel %vm58, %v57, 0.0
  %v61 = vsel %vm59, %v56, 0.0
  %v62 = vld [vmem:[%s1] sm:$0xff]
  %63 = vrot.lane.b32.xlu0 %v14, 16
  %v64 = vpop.permute.xlu0 %63
  %65 = vrot.lane.b32.xlu0 %v15, 16
  %v66 = vpop.permute.xlu0 %65
  %vm67 = vcmp.lt.s32.totalorder %v17, 16
  %v68 = vsel %vm67, %v64, %v66
  %v69 = vsel %vm67, %v66, %v64
  %v70 = vsel %vm43, %v69, 0.0
  %v71 = vsel %vm44, %v68, 0.0
  %s72 = scalar_lea.vmem %s1, 8
  %v73 = vld [vmem:[%s72] sm:$0xff]
  %vm74 = vcmask 64512
  %v76 = vsel %vm74, %v73, 0
  %78 = vmatprep.subr.mxu0 %v71
  %79 = vmatpush1.msra.mxu0 %v70
  %80 = vmatprep.subr.mxu0 0.0
  %81 = vmatpush1.msra.mxu0 0.0
  %82 = vmatprep.subr.mxu0 0.0
  %83 = vmatpush1.msra.mxu0 0.0
  %84 = vmatprep.subr.mxu0 0.0
  %85 = vmatpush1.msra.mxu0 0.0
  %86 = vmatprep.subr.mxu0 0.0
  %87 = vmatpush1.msra.mxu0 0.0
  %88 = vmatprep.subr.mxu0 0.0
  %89 = vmatpush1.msra.mxu0 0.0
  %90 = vmatprep.subr.mxu0 0.0
  %91 = vmatpush1.msra.mxu0 0.0
  %92 = vmatprep.subr.mxu0 0.0
  %93 = vmatpush1.msra.mxu0 0.0
  %94 = vmatprep.subr.mxu0 0.0
  %95 = vmatpush1.msra.mxu0 0.0
  %96 = vmatprep.subr.mxu0 0.0
  %97 = vmatpush1.msra.mxu0 0.0
  %98 = vmatprep.subr.mxu0 0.0
  %99 = vmatpush1.msra.mxu0 0.0
  %100 = vmatprep.subr.mxu0 0.0
  %101 = vmatpush1.msra.mxu0 0.0
  %102 = vmatprep.subr.mxu0 0.0
  %103 = vmatpush1.msra.mxu0 0.0
  %104 = vmatprep.subr.mxu0 0.0
  %105 = vmatpush1.msra.mxu0 0.0
  %106 = vmatprep.subr.mxu0 0.0
  %107 = vmatpush1.msra.mxu0 0.0
  %108 = vmatprep.subr.mxu0 0.0
  %109 = vmatpush1.msra.mxu0 0.0
  %110 = vmatprep.subr.mxu0 0.0
  %111 = vmatpush1.msra.mxu0 0.0
  %112 = vmatprep.subr.mxu0 0.0
  %113 = vmatpush1.msra.mxu0 0.0
  %114 = vmatprep.subr.mxu0 0.0
  %115 = vmatpush1.msra.mxu0 0.0
  %116 = vmatprep.subr.mxu0 0.0
  %117 = vmatpush1.msra.mxu0 0.0
  %118 = vmatprep.subr.mxu0 0.0
  %119 = vmatpush1.msra.mxu0 0.0
  %120 = vmatprep.subr.mxu0 0.0
  %121 = vmatpush1.msra.mxu0 0.0
  %122 = vmatprep.subr.mxu0 0.0
  %123 = vmatpush1.msra.mxu0 0.0
  %124 = vmatprep.subr.mxu0 0.0
  %125 = vmatpush1.msra.mxu0 0.0
  %126 = vmatprep.subr.mxu0 0.0
  %127 = vmatpush1.msra.mxu0 0.0
  %128 = vmatprep.subr.mxu0 0.0
  %129 = vmatpush1.msra.mxu0 0.0
  %130 = vmatprep.subr.mxu0 0.0
  %131 = vmatpush1.msra.mxu0 0.0
  %132 = vmatprep.subr.mxu0 0.0
  %133 = vmatpush1.msra.mxu0 0.0
  %134 = vmatprep.subr.mxu0 0.0
  %135 = vmatpush1.msra.mxu0 0.0
  %136 = vmatprep.subr.mxu0 0.0
  %137 = vmatpush1.msra.mxu0 0.0
  %138 = vmatprep.subr.mxu0 0.0
  %139 = vmatpush1.msra.mxu0 0.0
  %140 = vmatprep.subr.mxu0 0.0
  %141 = vmatpush1.msra.mxu0 0.0
  %142 = vmatprep.mubr.f32.mxu0 0.0
  %143 = vmatmul.mubr.f32.gmra.mrb[0].mxu0 %v76
  %v144 = vpop.f32.mrb[0].mxu0
  %v145 = vadd.f32 0.0, %v144
  %v146 = vpop.f32.mrb[0].mxu0
  %v147 = vadd.f32 0.0, %v146
  %148 = vdwg.mxu0
  %v150 = vsel %vm74, %v62, 0
  %152 = vmatprep.subr.mxu0 %v61
  %153 = vmatpush1.msra.mxu0 %v60
  %154 = vmatprep.subr.mxu0 0.0
  %155 = vmatpush1.msra.mxu0 0.0
  %156 = vmatprep.subr.mxu0 0.0
  %157 = vmatpush1.msra.mxu0 0.0
  %158 = vmatprep.subr.mxu0 0.0
  %159 = vmatpush1.msra.mxu0 0.0
  %160 = vmatprep.subr.mxu0 0.0
  %161 = vmatpush1.msra.mxu0 0.0
  %162 = vmatprep.subr.mxu0 0.0
  %163 = vmatpush1.msra.mxu0 0.0
  %164 = vmatprep.subr.mxu0 0.0
  %165 = vmatpush1.msra.mxu0 0.0
  %166 = vmatprep.subr.mxu0 0.0
  %167 = vmatpush1.msra.mxu0 0.0
  %168 = vmatprep.subr.mxu0 0.0
  %169 = vmatpush1.msra.mxu0 0.0
  %170 = vmatprep.subr.mxu0 0.0
  %171 = vmatpush1.msra.mxu0 0.0
  %172 = vmatprep.subr.mxu0 0.0
  %173 = vmatpush1.msra.mxu0 0.0
  %174 = vmatprep.subr.mxu0 0.0
  %175 = vmatpush1.msra.mxu0 0.0
  %176 = vmatprep.subr.mxu0 0.0
  %177 = vmatpush1.msra.mxu0 0.0
  %178 = vmatprep.subr.mxu0 0.0
  %179 = vmatpush1.msra.mxu0 0.0
  %180 = vmatprep.subr.mxu0 0.0
  %181 = vmatpush1.msra.mxu0 0.0
  %182 = vmatprep.subr.mxu0 0.0
  %183 = vmatpush1.msra.mxu0 0.0
  %184 = vmatprep.subr.mxu0 0.0
  %185 = vmatpush1.msra.mxu0 0.0
  %186 = vmatprep.subr.mxu0 0.0
  %187 = vmatpush1.msra.mxu0 0.0
  %188 = vmatprep.subr.mxu0 0.0
  %189 = vmatpush1.msra.mxu0 0.0
  %190 = vmatprep.subr.mxu0 0.0
  %191 = vmatpush1.msra.mxu0 0.0
  %192 = vmatprep.subr.mxu0 0.0
  %193 = vmatpush1.msra.mxu0 0.0
  %194 = vmatprep.subr.mxu0 0.0
  %195 = vmatpush1.msra.mxu0 0.0
  %196 = vmatprep.subr.mxu0 0.0
  %197 = vmatpush1.msra.mxu0 0.0
  %198 = vmatprep.subr.mxu0 0.0
  %199 = vmatpush1.msra.mxu0 0.0
  %200 = vmatprep.subr.mxu0 0.0
  %201 = vmatpush1.msra.mxu0 0.0
  %202 = vmatprep.subr.mxu0 0.0
  %203 = vmatpush1.msra.mxu0 0.0
  %204 = vmatprep.subr.mxu0 0.0
  %205 = vmatpush1.msra.mxu0 0.0
  %206 = vmatprep.subr.mxu0 0.0
  %207 = vmatpush1.msra.mxu0 0.0
  %208 = vmatprep.subr.mxu0 0.0
  %209 = vmatpush1.msra.mxu0 0.0
  %210 = vmatprep.subr.mxu0 0.0
  %211 = vmatpush1.msra.mxu0 0.0
  %212 = vmatprep.subr.mxu0 0.0
  %213 = vmatpush1.msra.mxu0 0.0
  %214 = vmatprep.subr.mxu0 0.0
  %215 = vmatpush1.msra.mxu0 0.0
  %216 = vmatprep.mubr.f32.mxu0 0.0
  %217 = vmatmul.mubr.f32.gmra.mrb[0].mxu0 %v150
  %v218 = vpop.f32.mrb[0].mxu0
  %v219 = vadd.f32 %v145, %v218
  %v220 = vpop.f32.mrb[0].mxu0
  %v221 = vadd.f32 %v147, %v220
  %222 = vdwg.mxu0
  %223 = vrot.lane.b32.xlu0 %v14, 15
  %v224 = vpop.permute.xlu0 %223
  %225 = vrot.lane.b32.xlu0 %v15, 15
  %v226 = vpop.permute.xlu0 %225
  %vm227 = vcmp.lt.s32.totalorder %v17, 15
  %v228 = vsel %vm227, %v224, %v226
  %v229 = vsel %vm227, %v226, %v224
  %vm230 = vmand %vm43, %vm49
  %vm231 = vmand %vm44, %vm50
  %v232 = vsel %vm230, %v229, 0.0
  %v233 = vsel %vm231, %v228, 0.0
  %s234 = scalar_lea.vmem %s1, 16
  %v235 = vld [vmem:[%s234] sm:$0xff]
  %v237 = vsel %vm74, %v235, 0
  %239 = vmatprep.subr.mxu0 %v233
  %240 = vmatpush1.msra.mxu0 %v232
  %241 = vmatprep.subr.mxu0 0.0
  %242 = vmatpush1.msra.mxu0 0.0
  %243 = vmatprep.subr.mxu0 0.0
  %244 = vmatpush1.msra.mxu0 0.0
  %245 = vmatprep.subr.mxu0 0.0
  %246 = vmatpush1.msra.mxu0 0.0
  %247 = vmatprep.subr.mxu0 0.0
  %248 = vmatpush1.msra.mxu0 0.0
  %249 = vmatprep.subr.mxu0 0.0
  %250 = vmatpush1.msra.mxu0 0.0
  %251 = vmatprep.subr.mxu0 0.0
  %252 = vmatpush1.msra.mxu0 0.0
  %253 = vmatprep.subr.mxu0 0.0
  %254 = vmatpush1.msra.mxu0 0.0
  %255 = vmatprep.subr.mxu0 0.0
  %256 = vmatpush1.msra.mxu0 0.0
  %257 = vmatprep.subr.mxu0 0.0
  %258 = vmatpush1.msra.mxu0 0.0
  %259 = vmatprep.subr.mxu0 0.0
  %260 = vmatpush1.msra.mxu0 0.0
  %261 = vmatprep.subr.mxu0 0.0
  %262 = vmatpush1.msra.mxu0 0.0
  %263 = vmatprep.subr.mxu0 0.0
  %264 = vmatpush1.msra.mxu0 0.0
  %265 = vmatprep.subr.mxu0 0.0
  %266 = vmatpush1.msra.mxu0 0.0
  %267 = vmatprep.subr.mxu0 0.0
  %268 = vmatpush1.msra.mxu0 0.0
  %269 = vmatprep.subr.mxu0 0.0
  %270 = vmatpush1.msra.mxu0 0.0
  %271 = vmatprep.subr.mxu0 0.0
  %272 = vmatpush1.msra.mxu0 0.0
  %273 = vmatprep.subr.mxu0 0.0
  %274 = vmatpush1.msra.mxu0 0.0
  %275 = vmatprep.subr.mxu0 0.0
  %276 = vmatpush1.msra.mxu0 0.0
  %277 = vmatprep.subr.mxu0 0.0
  %278 = vmatpush1.msra.mxu0 0.0
  %279 = vmatprep.subr.mxu0 0.0
  %280 = vmatpush1.msra.mxu0 0.0
  %281 = vmatprep.subr.mxu0 0.0
  %282 = vmatpush1.msra.mxu0 0.0
  %283 = vmatprep.subr.mxu0 0.0
  %284 = vmatpush1.msra.mxu0 0.0
  %285 = vmatprep.subr.mxu0 0.0
  %286 = vmatpush1.msra.mxu0 0.0
  %287 = vmatprep.subr.mxu0 0.0
  %288 = vmatpush1.msra.mxu0 0.0
  %289 = vmatprep.subr.mxu0 0.0
  %290 = vmatpush1.msra.mxu0 0.0
  %291 = vmatprep.subr.mxu0 0.0
  %292 = vmatpush1.msra.mxu0 0.0
  %293 = vmatprep.subr.mxu0 0.0
  %294 = vmatpush1.msra.mxu0 0.0
  %295 = vmatprep.subr.mxu0 0.0
  %296 = vmatpush1.msra.mxu0 0.0
  %297 = vmatprep.subr.mxu0 0.0
  %298 = vmatpush1.msra.mxu0 0.0
  %299 = vmatprep.subr.mxu0 0.0
  %300 = vmatpush1.msra.mxu0 0.0
  %301 = vmatprep.subr.mxu0 0.0
  %302 = vmatpush1.msra.mxu0 0.0
  %303 = vmatprep.mubr.f32.mxu0 0.0
  %304 = vmatmul.mubr.f32.gmra.mrb[0].mxu0 %v237
  %v305 = vpop.f32.mrb[0].mxu0
  %v306 = vadd.f32 0.0, %v305
  %v307 = vpop.f32.mrb[0].mxu0
  %v308 = vadd.f32 0.0, %v307
  %309 = vdwg.mxu0
  %v310 = vadd.f32 %v219, %v306
  %v311 = vadd.f32 %v221, %v308
  %312 = vrot.lane.b32.xlu0 %v14, 1
  %v313 = vpop.permute.xlu0 %312
  %314 = vrot.lane.b32.xlu0 %v15, 1
  %v315 = vpop.permute.xlu0 %314
  %vm316 = vcmp.lt.s32.totalorder %v17, 1
  %v317 = vsel %vm316, %v313, %v315
  %v318 = vsel %vm316, %v315, %v313
  %v319 = vsel %vm47, %v318, 0.0
  %v320 = vsel %vm48, %v317, 0.0
  %s321 = scalar_lea.vmem %s1, 24
  %v322 = vld [vmem:[%s321] sm:$0xff]
  %v324 = vsel %vm74, %v322, 0
  %326 = vmatprep.subr.mxu0 %v320
  %327 = vmatpush1.msra.mxu0 %v319
  %328 = vmatprep.subr.mxu0 0.0
  %329 = vmatpush1.msra.mxu0 0.0
  %330 = vmatprep.subr.mxu0 0.0
  %331 = vmatpush1.msra.mxu0 0.0
  %332 = vmatprep.subr.mxu0 0.0
  %333 = vmatpush1.msra.mxu0 0.0
  %334 = vmatprep.subr.mxu0 0.0
  %335 = vmatpush1.msra.mxu0 0.0
  %336 = vmatprep.subr.mxu0 0.0
  %337 = vmatpush1.msra.mxu0 0.0
  %338 = vmatprep.subr.mxu0 0.0
  %339 = vmatpush1.msra.mxu0 0.0
  %340 = vmatprep.subr.mxu0 0.0
  %341 = vmatpush1.msra.mxu0 0.0
  %342 = vmatprep.subr.mxu0 0.0
  %343 = vmatpush1.msra.mxu0 0.0
  %344 = vmatprep.subr.mxu0 0.0
  %345 = vmatpush1.msra.mxu0 0.0
  %346 = vmatprep.subr.mxu0 0.0
  %347 = vmatpush1.msra.mxu0 0.0
  %348 = vmatprep.subr.mxu0 0.0
  %349 = vmatpush1.msra.mxu0 0.0
  %350 = vmatprep.subr.mxu0 0.0
  %351 = vmatpush1.msra.mxu0 0.0
  %352 = vmatprep.subr.mxu0 0.0
  %353 = vmatpush1.msra.mxu0 0.0
  %354 = vmatprep.subr.mxu0 0.0
  %355 = vmatpush1.msra.mxu0 0.0
  %356 = vmatprep.subr.mxu0 0.0
  %357 = vmatpush1.msra.mxu0 0.0
  %358 = vmatprep.subr.mxu0 0.0
  %359 = vmatpush1.msra.mxu0 0.0
  %360 = vmatprep.subr.mxu0 0.0
  %361 = vmatpush1.msra.mxu0 0.0
  %362 = vmatprep.subr.mxu0 0.0
  %363 = vmatpush1.msra.mxu0 0.0
  %364 = vmatprep.subr.mxu0 0.0
  %365 = vmatpush1.msra.mxu0 0.0
  %366 = vmatprep.subr.mxu0 0.0
  %367 = vmatpush1.msra.mxu0 0.0
  %368 = vmatprep.subr.mxu0 0.0
  %369 = vmatpush1.msra.mxu0 0.0
  %370 = vmatprep.subr.mxu0 0.0
  %371 = vmatpush1.msra.mxu0 0.0
  %372 = vmatprep.subr.mxu0 0.0
  %373 = vmatpush1.msra.mxu0 0.0
  %374 = vmatprep.subr.mxu0 0.0
  %375 = vmatpush1.msra.mxu0 0.0
  %376 = vmatprep.subr.mxu0 0.0
  %377 = vmatpush1.msra.mxu0 0.0
  %378 = vmatprep.subr.mxu0 0.0
  %379 = vmatpush1.msra.mxu0 0.0
  %380 = vmatprep.subr.mxu0 0.0
  %381 = vmatpush1.msra.mxu0 0.0
  %382 = vmatprep.subr.mxu0 0.0
  %383 = vmatpush1.msra.mxu0 0.0
  %384 = vmatprep.subr.mxu0 0.0
  %385 = vmatpush1.msra.mxu0 0.0
  %386 = vmatprep.subr.mxu0 0.0
  %387 = vmatpush1.msra.mxu0 0.0
  %388 = vmatprep.subr.mxu0 0.0
  %389 = vmatpush1.msra.mxu0 0.0
  %390 = vmatprep.mubr.f32.mxu0 0.0
  %391 = vmatmul.mubr.f32.gmra.mrb[0].mxu0 %v324
  %v392 = vpop.f32.mrb[0].mxu0
  %v393 = vadd.f32 0.0, %v392
  %v394 = vpop.f32.mrb[0].mxu0
  %v395 = vadd.f32 0.0, %v394
  %396 = vdwg.mxu0
  %v397 = vadd.f32 %v310, %v393
  %v398 = vadd.f32 %v311, %v395
  %s399 = scalar_lea.vmem %s1, 32
  %v400 = vld [vmem:[%s399] sm:$0xff]
  %v402 = vsel %vm74, %v400, 0
  %404 = vmatprep.subr.mxu0 %v15
  %405 = vmatpush1.msra.mxu0 %v14
  %406 = vmatprep.subr.mxu0 0.0
  %407 = vmatpush1.msra.mxu0 0.0
  %408 = vmatprep.subr.mxu0 0.0
  %409 = vmatpush1.msra.mxu0 0.0
  %410 = vmatprep.subr.mxu0 0.0
  %411 = vmatpush1.msra.mxu0 0.0
  %412 = vmatprep.subr.mxu0 0.0
  %413 = vmatpush1.msra.mxu0 0.0
  %414 = vmatprep.subr.mxu0 0.0
  %415 = vmatpush1.msra.mxu0 0.0
  %416 = vmatprep.subr.mxu0 0.0
  %417 = vmatpush1.msra.mxu0 0.0
  %418 = vmatprep.subr.mxu0 0.0
  %419 = vmatpush1.msra.mxu0 0.0
  %420 = vmatprep.subr.mxu0 0.0
  %421 = vmatpush1.msra.mxu0 0.0
  %422 = vmatprep.subr.mxu0 0.0
  %423 = vmatpush1.msra.mxu0 0.0
  %424 = vmatprep.subr.mxu0 0.0
  %425 = vmatpush1.msra.mxu0 0.0
  %426 = vmatprep.subr.mxu0 0.0
  %427 = vmatpush1.msra.mxu0 0.0
  %428 = vmatprep.subr.mxu0 0.0
  %429 = vmatpush1.msra.mxu0 0.0
  %430 = vmatprep.subr.mxu0 0.0
  %431 = vmatpush1.msra.mxu0 0.0
  %432 = vmatprep.subr.mxu0 0.0
  %433 = vmatpush1.msra.mxu0 0.0
  %434 = vmatprep.subr.mxu0 0.0
  %435 = vmatpush1.msra.mxu0 0.0
  %436 = vmatprep.subr.mxu0 0.0
  %437 = vmatpush1.msra.mxu0 0.0
  %438 = vmatprep.subr.mxu0 0.0
  %439 = vmatpush1.msra.mxu0 0.0
  %440 = vmatprep.subr.mxu0 0.0
  %441 = vmatpush1.msra.mxu0 0.0
  %442 = vmatprep.subr.mxu0 0.0
  %443 = vmatpush1.msra.mxu0 0.0
  %444 = vmatprep.subr.mxu0 0.0
  %445 = vmatpush1.msra.mxu0 0.0
  %446 = vmatprep.subr.mxu0 0.0
  %447 = vmatpush1.msra.mxu0 0.0
  %448 = vmatprep.subr.mxu0 0.0
  %449 = vmatpush1.msra.mxu0 0.0
  %450 = vmatprep.subr.mxu0 0.0
  %451 = vmatpush1.msra.mxu0 0.0
  %452 = vmatprep.subr.mxu0 0.0
  %453 = vmatpush1.msra.mxu0 0.0
  %454 = vmatprep.subr.mxu0 0.0
  %455 = vmatpush1.msra.mxu0 0.0
  %456 = vmatprep.subr.mxu0 0.0
  %457 = vmatpush1.msra.mxu0 0.0
  %458 = vmatprep.subr.mxu0 0.0
  %459 = vmatpush1.msra.mxu0 0.0
  %460 = vmatprep.subr.mxu0 0.0
  %461 = vmatpush1.msra.mxu0 0.0
  %462 = vmatprep.subr.mxu0 0.0
  %463 = vmatpush1.msra.mxu0 0.0
  %464 = vmatprep.subr.mxu0 0.0
  %465 = vmatpush1.msra.mxu0 0.0
  %466 = vmatprep.subr.mxu0 0.0
  %467 = vmatpush1.msra.mxu0 0.0
  %468 = vmatprep.mubr.f32.mxu0 0.0
  %469 = vmatmul.mubr.f32.gmra.mrb[0].mxu0 %v402
  %v470 = vpop.f32.mrb[0].mxu0
  %v471 = vadd.f32 0.0, %v470
  %v472 = vpop.f32.mrb[0].mxu0
  %v473 = vadd.f32 0.0, %v472
  %474 = vdwg.mxu0
  %v475 = vadd.f32 %v397, %v471
  %v476 = vadd.f32 %v398, %v473
  %477 = vrot.lane.b32.xlu0 %v14, 127
  %v478 = vpop.permute.xlu0 %477
  %479 = vrot.lane.b32.xlu0 %v15, 127
  %v480 = vpop.permute.xlu0 %479
  %vm481 = vcmp.lt.s32.totalorder %v17, 127
  %v482 = vsel %vm481, %v478, %v480
  %v483 = vsel %vm481, %v480, %v478
  %v484 = vsel %vm49, %v482, 0.0
  %v485 = vsel %vm50, %v483, 0.0
  %s486 = scalar_lea.vmem %s1, 40
  %v487 = vld [vmem:[%s486] sm:$0xff]
  %v489 = vsel %vm74, %v487, 0
  %491 = vmatprep.subr.mxu0 %v485
  %492 = vmatpush1.msra.mxu0 %v484
  %493 = vmatprep.subr.mxu0 0.0
  %494 = vmatpush1.msra.mxu0 0.0
  %495 = vmatprep.subr.mxu0 0.0
  %496 = vmatpush1.msra.mxu0 0.0
  %497 = vmatprep.subr.mxu0 0.0
  %498 = vmatpush1.msra.mxu0 0.0
  %499 = vmatprep.subr.mxu0 0.0
  %500 = vmatpush1.msra.mxu0 0.0
  %501 = vmatprep.subr.mxu0 0.0
  %502 = vmatpush1.msra.mxu0 0.0
  %503 = vmatprep.subr.mxu0 0.0
  %504 = vmatpush1.msra.mxu0 0.0
  %505 = vmatprep.subr.mxu0 0.0
  %506 = vmatpush1.msra.mxu0 0.0
  %507 = vmatprep.subr.mxu0 0.0
  %508 = vmatpush1.msra.mxu0 0.0
  %509 = vmatprep.subr.mxu0 0.0
  %510 = vmatpush1.msra.mxu0 0.0
  %511 = vmatprep.subr.mxu0 0.0
  %512 = vmatpush1.msra.mxu0 0.0
  %513 = vmatprep.subr.mxu0 0.0
  %514 = vmatpush1.msra.mxu0 0.0
  %515 = vmatprep.subr.mxu0 0.0
  %516 = vmatpush1.msra.mxu0 0.0
  %517 = vmatprep.subr.mxu0 0.0
  %518 = vmatpush1.msra.mxu0 0.0
  %519 = vmatprep.subr.mxu0 0.0
  %520 = vmatpush1.msra.mxu0 0.0
  %521 = vmatprep.subr.mxu0 0.0
  %522 = vmatpush1.msra.mxu0 0.0
  %523 = vmatprep.subr.mxu0 0.0
  %524 = vmatpush1.msra.mxu0 0.0
  %525 = vmatprep.subr.mxu0 0.0
  %526 = vmatpush1.msra.mxu0 0.0
  %527 = vmatprep.subr.mxu0 0.0
  %528 = vmatpush1.msra.mxu0 0.0
  %529 = vmatprep.subr.mxu0 0.0
  %530 = vmatpush1.msra.mxu0 0.0
  %531 = vmatprep.subr.mxu0 0.0
  %532 = vmatpush1.msra.mxu0 0.0
  %533 = vmatprep.subr.mxu0 0.0
  %534 = vmatpush1.msra.mxu0 0.0
  %535 = vmatprep.subr.mxu0 0.0
  %536 = vmatpush1.msra.mxu0 0.0
  %537 = vmatprep.subr.mxu0 0.0
  %538 = vmatpush1.msra.mxu0 0.0
  %539 = vmatprep.subr.mxu0 0.0
  %540 = vmatpush1.msra.mxu0 0.0
  %541 = vmatprep.subr.mxu0 0.0
  %542 = vmatpush1.msra.mxu0 0.0
  %543 = vmatprep.subr.mxu0 0.0
  %544 = vmatpush1.msra.mxu0 0.0
  %545 = vmatprep.subr.mxu0 0.0
  %546 = vmatpush1.msra.mxu0 0.0
  %547 = vmatprep.subr.mxu0 0.0
  %548 = vmatpush1.msra.mxu0 0.0
  %549 = vmatprep.subr.mxu0 0.0
  %550 = vmatpush1.msra.mxu0 0.0
  %551 = vmatprep.subr.mxu0 0.0
  %552 = vmatpush1.msra.mxu0 0.0
  %553 = vmatprep.subr.mxu0 0.0
  %554 = vmatpush1.msra.mxu0 0.0
  %555 = vmatprep.mubr.f32.mxu0 0.0
  %556 = vmatmul.mubr.f32.gmra.mrb[0].mxu0 %v489
  %v557 = vpop.f32.mrb[0].mxu0
  %v558 = vadd.f32 0.0, %v557
  %v559 = vpop.f32.mrb[0].mxu0
  %v560 = vadd.f32 0.0, %v559
  %561 = vdwg.mxu0
  %v562 = vadd.f32 %v475, %v558
  %v563 = vadd.f32 %v476, %v560
  %564 = vrot.lane.b32.xlu0 %v14, 113
  %v565 = vpop.permute.xlu0 %564
  %566 = vrot.lane.b32.xlu0 %v15, 113
  %v567 = vpop.permute.xlu0 %566
  %vm568 = vcmp.lt.s32.totalorder %v17, 113
  %v569 = vsel %vm568, %v565, %v567
  %v570 = vsel %vm568, %v567, %v565
  %vm571 = vmand %vm45, %vm47
  %vm572 = vmand %vm46, %vm48
  %v573 = vsel %vm571, %v569, 0.0
  %v574 = vsel %vm572, %v570, 0.0
  %s575 = scalar_lea.vmem %s1, 48
  %v576 = vld [vmem:[%s575] sm:$0xff]
  %v578 = vsel %vm74, %v576, 0
  %580 = vmatprep.subr.mxu0 %v574
  %581 = vmatpush1.msra.mxu0 %v573
  %582 = vmatprep.subr.mxu0 0.0
  %583 = vmatpush1.msra.mxu0 0.0
  %584 = vmatprep.subr.mxu0 0.0
  %585 = vmatpush1.msra.mxu0 0.0
  %586 = vmatprep.subr.mxu0 0.0
  %587 = vmatpush1.msra.mxu0 0.0
  %588 = vmatprep.subr.mxu0 0.0
  %589 = vmatpush1.msra.mxu0 0.0
  %590 = vmatprep.subr.mxu0 0.0
  %591 = vmatpush1.msra.mxu0 0.0
  %592 = vmatprep.subr.mxu0 0.0
  %593 = vmatpush1.msra.mxu0 0.0
  %594 = vmatprep.subr.mxu0 0.0
  %595 = vmatpush1.msra.mxu0 0.0
  %596 = vmatprep.subr.mxu0 0.0
  %597 = vmatpush1.msra.mxu0 0.0
  %598 = vmatprep.subr.mxu0 0.0
  %599 = vmatpush1.msra.mxu0 0.0
  %600 = vmatprep.subr.mxu0 0.0
  %601 = vmatpush1.msra.mxu0 0.0
  %602 = vmatprep.subr.mxu0 0.0
  %603 = vmatpush1.msra.mxu0 0.0
  %604 = vmatprep.subr.mxu0 0.0
  %605 = vmatpush1.msra.mxu0 0.0
  %606 = vmatprep.subr.mxu0 0.0
  %607 = vmatpush1.msra.mxu0 0.0
  %608 = vmatprep.subr.mxu0 0.0
  %609 = vmatpush1.msra.mxu0 0.0
  %610 = vmatprep.subr.mxu0 0.0
  %611 = vmatpush1.msra.mxu0 0.0
  %612 = vmatprep.subr.mxu0 0.0
  %613 = vmatpush1.msra.mxu0 0.0
  %614 = vmatprep.subr.mxu0 0.0
  %615 = vmatpush1.msra.mxu0 0.0
  %616 = vmatprep.subr.mxu0 0.0
  %617 = vmatpush1.msra.mxu0 0.0
  %618 = vmatprep.subr.mxu0 0.0
  %619 = vmatpush1.msra.mxu0 0.0
  %620 = vmatprep.subr.mxu0 0.0
  %621 = vmatpush1.msra.mxu0 0.0
  %622 = vmatprep.subr.mxu0 0.0
  %623 = vmatpush1.msra.mxu0 0.0
  %624 = vmatprep.subr.mxu0 0.0
  %625 = vmatpush1.msra.mxu0 0.0
  %626 = vmatprep.subr.mxu0 0.0
  %627 = vmatpush1.msra.mxu0 0.0
  %628 = vmatprep.subr.mxu0 0.0
  %629 = vmatpush1.msra.mxu0 0.0
  %630 = vmatprep.subr.mxu0 0.0
  %631 = vmatpush1.msra.mxu0 0.0
  %632 = vmatprep.subr.mxu0 0.0
  %633 = vmatpush1.msra.mxu0 0.0
  %634 = vmatprep.subr.mxu0 0.0
  %635 = vmatpush1.msra.mxu0 0.0
  %636 = vmatprep.subr.mxu0 0.0
  %637 = vmatpush1.msra.mxu0 0.0
  %638 = vmatprep.subr.mxu0 0.0
  %639 = vmatpush1.msra.mxu0 0.0
  %640 = vmatprep.subr.mxu0 0.0
  %641 = vmatpush1.msra.mxu0 0.0
  %642 = vmatprep.subr.mxu0 0.0
  %643 = vmatpush1.msra.mxu0 0.0
  %644 = vmatprep.mubr.f32.mxu0 0.0
  %645 = vmatmul.mubr.f32.gmra.mrb[0].mxu0 %v578
  %v646 = vpop.f32.mrb[0].mxu0
  %v647 = vadd.f32 0.0, %v646
  %v648 = vpop.f32.mrb[0].mxu0
  %v649 = vadd.f32 0.0, %v648
  %650 = vdwg.mxu0
  %v651 = vadd.f32 %v562, %v647
  %v652 = vadd.f32 %v563, %v649
  %653 = vrot.lane.b32.xlu0 %v14, 112
  %v654 = vpop.permute.xlu0 %653
  %655 = vrot.lane.b32.xlu0 %v15, 112
  %v656 = vpop.permute.xlu0 %655
  %vm657 = vcmp.lt.s32.totalorder %v17, 112
  %v658 = vsel %vm657, %v654, %v656
  %v659 = vsel %vm657, %v656, %v654
  %v660 = vsel %vm45, %v658, 0.0
  %v661 = vsel %vm46, %v659, 0.0
  %s662 = scalar_lea.vmem %s1, 56
  %v663 = vld [vmem:[%s662] sm:$0xff]
  %v665 = vsel %vm74, %v663, 0
  %667 = vmatprep.subr.mxu0 %v661
  %668 = vmatpush1.msra.mxu0 %v660
  %669 = vmatprep.subr.mxu0 0.0
  %670 = vmatpush1.msra.mxu0 0.0
  %671 = vmatprep.subr.mxu0 0.0
  %672 = vmatpush1.msra.mxu0 0.0
  %673 = vmatprep.subr.mxu0 0.0
  %674 = vmatpush1.msra.mxu0 0.0
  %675 = vmatprep.subr.mxu0 0.0
  %676 = vmatpush1.msra.mxu0 0.0
  %677 = vmatprep.subr.mxu0 0.0
  %678 = vmatpush1.msra.mxu0 0.0
  %679 = vmatprep.subr.mxu0 0.0
  %680 = vmatpush1.msra.mxu0 0.0
  %681 = vmatprep.subr.mxu0 0.0
  %682 = vmatpush1.msra.mxu0 0.0
  %683 = vmatprep.subr.mxu0 0.0
  %684 = vmatpush1.msra.mxu0 0.0
  %685 = vmatprep.subr.mxu0 0.0
  %686 = vmatpush1.msra.mxu0 0.0
  %687 = vmatprep.subr.mxu0 0.0
  %688 = vmatpush1.msra.mxu0 0.0
  %689 = vmatprep.subr.mxu0 0.0
  %690 = vmatpush1.msra.mxu0 0.0
  %691 = vmatprep.subr.mxu0 0.0
  %692 = vmatpush1.msra.mxu0 0.0
  %693 = vmatprep.subr.mxu0 0.0
  %694 = vmatpush1.msra.mxu0 0.0
  %695 = vmatprep.subr.mxu0 0.0
  %696 = vmatpush1.msra.mxu0 0.0
  %697 = vmatprep.subr.mxu0 0.0
  %698 = vmatpush1.msra.mxu0 0.0
  %699 = vmatprep.subr.mxu0 0.0
  %700 = vmatpush1.msra.mxu0 0.0
  %701 = vmatprep.subr.mxu0 0.0
  %702 = vmatpush1.msra.mxu0 0.0
  %703 = vmatprep.subr.mxu0 0.0
  %704 = vmatpush1.msra.mxu0 0.0
  %705 = vmatprep.subr.mxu0 0.0
  %706 = vmatpush1.msra.mxu0 0.0
  %707 = vmatprep.subr.mxu0 0.0
  %708 = vmatpush1.msra.mxu0 0.0
  %709 = vmatprep.subr.mxu0 0.0
  %710 = vmatpush1.msra.mxu0 0.0
  %711 = vmatprep.subr.mxu0 0.0
  %712 = vmatpush1.msra.mxu0 0.0
  %713 = vmatprep.subr.mxu0 0.0
  %714 = vmatpush1.msra.mxu0 0.0
  %715 = vmatprep.subr.mxu0 0.0
  %716 = vmatpush1.msra.mxu0 0.0
  %717 = vmatprep.subr.mxu0 0.0
  %718 = vmatpush1.msra.mxu0 0.0
  %719 = vmatprep.subr.mxu0 0.0
  %720 = vmatpush1.msra.mxu0 0.0
  %721 = vmatprep.subr.mxu0 0.0
  %722 = vmatpush1.msra.mxu0 0.0
  %723 = vmatprep.subr.mxu0 0.0
  %724 = vmatpush1.msra.mxu0 0.0
  %725 = vmatprep.subr.mxu0 0.0
  %726 = vmatpush1.msra.mxu0 0.0
  %727 = vmatprep.subr.mxu0 0.0
  %728 = vmatpush1.msra.mxu0 0.0
  %729 = vmatprep.subr.mxu0 0.0
  %730 = vmatpush1.msra.mxu0 0.0
  %731 = vmatprep.mubr.f32.mxu0 0.0
  %732 = vmatmul.mubr.f32.gmra.mrb[0].mxu0 %v665
  %v733 = vpop.f32.mrb[0].mxu0
  %v734 = vadd.f32 0.0, %v733
  %v735 = vpop.f32.mrb[0].mxu0
  %v736 = vadd.f32 0.0, %v735
  %737 = vdwg.mxu0
  %v738 = vadd.f32 %v651, %v734
  %v739 = vadd.f32 %v652, %v736
  %740 = vrot.lane.b32.xlu0 %v14, 111
  %v741 = vpop.permute.xlu0 %740
  %742 = vrot.lane.b32.xlu0 %v15, 111
  %v743 = vpop.permute.xlu0 %742
  %vm744 = vcmp.lt.s32.totalorder %v17, 111
  %v745 = vsel %vm744, %v741, %v743
  %v746 = vsel %vm744, %v743, %v741
  %vm747 = vmand %vm45, %vm49
  %vm748 = vmand %vm46, %vm50
  %v749 = vsel %vm747, %v745, 0.0
  %v750 = vsel %vm748, %v746, 0.0
  %s751 = scalar_lea.vmem %s1, 64
  %v752 = vld [vmem:[%s751] sm:$0xff]
  %v754 = vsel %vm74, %v752, 0
  %756 = vmatprep.subr.mxu0 %v750
  %757 = vmatpush1.msra.mxu0 %v749
  %758 = vmatprep.subr.mxu0 0.0
  %759 = vmatpush1.msra.mxu0 0.0
  %760 = vmatprep.subr.mxu0 0.0
  %761 = vmatpush1.msra.mxu0 0.0
  %762 = vmatprep.subr.mxu0 0.0
  %763 = vmatpush1.msra.mxu0 0.0
  %764 = vmatprep.subr.mxu0 0.0
  %765 = vmatpush1.msra.mxu0 0.0
  %766 = vmatprep.subr.mxu0 0.0
  %767 = vmatpush1.msra.mxu0 0.0
  %768 = vmatprep.subr.mxu0 0.0
  %769 = vmatpush1.msra.mxu0 0.0
  %770 = vmatprep.subr.mxu0 0.0
  %771 = vmatpush1.msra.mxu0 0.0
  %772 = vmatprep.subr.mxu0 0.0
  %773 = vmatpush1.msra.mxu0 0.0
  %774 = vmatprep.subr.mxu0 0.0
  %775 = vmatpush1.msra.mxu0 0.0
  %776 = vmatprep.subr.mxu0 0.0
  %777 = vmatpush1.msra.mxu0 0.0
  %778 = vmatprep.subr.mxu0 0.0
  %779 = vmatpush1.msra.mxu0 0.0
  %780 = vmatprep.subr.mxu0 0.0
  %781 = vmatpush1.msra.mxu0 0.0
  %782 = vmatprep.subr.mxu0 0.0
  %783 = vmatpush1.msra.mxu0 0.0
  %784 = vmatprep.subr.mxu0 0.0
  %785 = vmatpush1.msra.mxu0 0.0
  %786 = vmatprep.subr.mxu0 0.0
  %787 = vmatpush1.msra.mxu0 0.0
  %788 = vmatprep.subr.mxu0 0.0
  %789 = vmatpush1.msra.mxu0 0.0
  %790 = vmatprep.subr.mxu0 0.0
  %791 = vmatpush1.msra.mxu0 0.0
  %792 = vmatprep.subr.mxu0 0.0
  %793 = vmatpush1.msra.mxu0 0.0
  %794 = vmatprep.subr.mxu0 0.0
  %795 = vmatpush1.msra.mxu0 0.0
  %796 = vmatprep.subr.mxu0 0.0
  %797 = vmatpush1.msra.mxu0 0.0
  %798 = vmatprep.subr.mxu0 0.0
  %799 = vmatpush1.msra.mxu0 0.0
  %800 = vmatprep.subr.mxu0 0.0
  %801 = vmatpush1.msra.mxu0 0.0
  %802 = vmatprep.subr.mxu0 0.0
  %803 = vmatpush1.msra.mxu0 0.0
  %804 = vmatprep.subr.mxu0 0.0
  %805 = vmatpush1.msra.mxu0 0.0
  %806 = vmatprep.subr.mxu0 0.0
  %807 = vmatpush1.msra.mxu0 0.0
  %808 = vmatprep.subr.mxu0 0.0
  %809 = vmatpush1.msra.mxu0 0.0
  %810 = vmatprep.subr.mxu0 0.0
  %811 = vmatpush1.msra.mxu0 0.0
  %812 = vmatprep.subr.mxu0 0.0
  %813 = vmatpush1.msra.mxu0 0.0
  %814 = vmatprep.subr.mxu0 0.0
  %815 = vmatpush1.msra.mxu0 0.0
  %816 = vmatprep.subr.mxu0 0.0
  %817 = vmatpush1.msra.mxu0 0.0
  %818 = vmatprep.subr.mxu0 0.0
  %819 = vmatpush1.msra.mxu0 0.0
  %820 = vmatprep.mubr.f32.mxu0 0.0
  %821 = vmatmul.mubr.f32.gmra.mrb[0].mxu0 %v754
  %v822 = vpop.f32.mrb[0].mxu0
  %v823 = vadd.f32 0.0, %v822
  %v824 = vpop.f32.mrb[0].mxu0
  %v825 = vadd.f32 0.0, %v824
  %826 = vdwg.mxu0
  %v827 = vadd.f32 %v738, %v823
  %v828 = vadd.f32 %v739, %v825
  %v829 = vld [vmem:[%s2] sm:$0xff]
  %831 = vset.pattern.permute.xlu0 0
  %832 = vperm.xlu0 %831, %v829
  %v833 = vpop.permute.xlu0 %832
  %v835 = vadd.f32 %v827, %v833
  %v836 = vadd.f32 %v828, %v833
  %v837 = vmul.f32 %v835, 0.5
  %v838 = vmul.f32 %v836, 0.5
  %v839 = vtanh.pop %v837
  %v840 = vtanh.pop %v838
  %v841 = vadd.f32 %v839, 1.0
  %v842 = vadd.f32 %v840, 1.0
  %v843 = vmul.f32 %v841, 0.5
  %v844 = vmul.f32 %v842, 0.5
  %v845 = vmul.f32 %v14, %v843
  %v846 = vmul.f32 %v15, %v844
  %847 = vst [vmem:[%s3] sm:$0xff] %v845
  %848 = vst [vmem:[%s3 + $0x8] sm:$0xff] %v846
  // Predicated region
  $region14: #{gate_forward.1} parent=0 // pred_check
    _
  $region15: #{gate_forward.1} parent=0 // pred_check_branch
    %850 = sbr.rel (0) target = $region17
  $region16: #{gate_forward.1} parent=0 // pred_region
    _
  $region17: #{gate_forward.1} parent=0 // pred_fallthru
    _
  // Predicated region
  $region18: #{gate_forward.1} parent=0 // pred_check
    _
  $region19: #{gate_forward.1} parent=0 // pred_check_branch
    %852 = sbr.rel (0) target = $region21
  $region20: #{gate_forward.1} parent=0 // pred_region
    _
  $region21: #{gate_forward.1} parent=0 // pred_fallthru
    _

</llo_original>
